<compile_context>
chip_gen: v6e
topology: v6e:2x2x1
jax: 0.10.0
libtpu: 0.0.40
codegen_flags: <defaults>
</compile_context>

<pallas_src>
import functools

import jax
import jax.numpy as jnp
from jax.experimental import pallas as pl
from jax.experimental.pallas import tpu as pltpu


def _round_up(x, m):
    return ((x + m - 1) // m) * m


def _adaptive_ln_kernel(x_ref, o_ref, *, eps, C, k):
    # Block: (TB, Cdim, TS); reduction over axis=1 (channels) is fully in-tile.
    xf = x_ref[...].astype(jnp.float32)
    sq_sum = jnp.sum(xf * xf, axis=1, keepdims=True)            # (TB, 1, TS)
    # max(sqrt(s), eps) == sqrt(max(s, eps^2)) exactly for normal eps^2.
    inv = jax.lax.rsqrt(jnp.maximum(sq_sum, eps * eps))         # EUP, per column only
    scale = (C * k) * inv                                       # fold constants per column
    # Re-read x_ref (instead of reusing xf) so bf16 inputs don't keep a full
    # f32 copy live across the reduction barrier; no-op for f32 inputs.
    o_ref[...] = (C - x_ref[...].astype(jnp.float32) * scale).astype(o_ref.dtype)


def _vmem_budget():
    """Returns (vmem_limit_bytes, per-buffer tile cap, physical VMEM bytes)."""
    try:
        phys = int(pltpu.get_tpu_info().vmem_capacity_bytes)
    except Exception:
        phys = 64 * 1024 * 1024                                  # conservative (v7x-sized)
    if phys >= 128 * 1024 * 1024:                                # v5e / v6e
        return 64 * 1024 * 1024, 8 * 1024 * 1024, phys
    return 48 * 1024 * 1024, 5 * 1024 * 1024, phys               # v7x


def adaptive_layer_norm(x_nchw, *, eps=1e-12, C=1.0, k=0.1):
    """x_nchw: [B, Cdim, H, W]; F.normalize along dim=1, then C*(1 - k*y)."""
    B, Cdim, H, W = x_nchw.shape
    S = H * W
    x = x_nchw.reshape(B, Cdim, S)                               # row-major view, free

    itemsize = jnp.dtype(x.dtype).itemsize
    sublane = {4: 8, 2: 16, 1: 32}.get(itemsize, 8)
    C_pad = _round_up(Cdim, sublane)                             # real sublane footprint

    vmem_limit, tile_cap, phys_vmem = _vmem_budget()

    # Bytes per (one batch row, 128 lanes) column group, incl. f32 compute temp
    # when the input dtype is narrower than f32.
    bytes_per_group = C_pad * 128 * itemsize
    if itemsize < 4:
        bytes_per_group += C_pad * 128 * 4

    s_groups = pl.cdiv(S, 128)
    max_groups = max(1, tile_cap // bytes_per_group)
    TS = 128 * min(max_groups, s_groups)
    TB = max(1, min(B, tile_cap // max(1, bytes_per_group * (TS // 128))))

    # Guarantee >= 2 grid steps along a parallel axis when possible (v7x: 2 TCs).
    gb, gs = pl.cdiv(B, TB), pl.cdiv(S, TS)
    if gb * gs == 1:
        if S > 128:
            TS = _round_up(pl.cdiv(S, 2), 128)
        elif B > 1:
            TB = pl.cdiv(B, 2)
        gb, gs = pl.cdiv(B, TB), pl.cdiv(S, TS)

    # Make sure the double-buffered in/out tiles (+ f32 temps) fit the limit,
    # even for very large Cdim where the minimum (TS=128, TB=1) tile is big.
    tile_bytes = TB * (TS // 128) * bytes_per_group
    needed = 4 * tile_bytes + 2 * TB * C_pad * TS * 4 + (2 << 20)
    vmem_limit = min(max(vmem_limit, needed), max(phys_vmem - (8 << 20), 16 << 20))

    kernel = functools.partial(_adaptive_ln_kernel,
                               eps=float(eps), C=float(C), k=float(k))

    n_elem = B * Cdim * S
    cost = pl.CostEstimate(flops=4 * n_elem,
                           transcendentals=B * S,
                           bytes_accessed=2 * n_elem * itemsize)

    out = pl.pallas_call(
        kernel,
        out_shape=jax.ShapeDtypeStruct((B, Cdim, S), x.dtype),
        grid_spec=pl.GridSpec(
            grid=(gb, gs),
            in_specs=[pl.BlockSpec((TB, Cdim, TS), lambda b, s: (b, 0, s))],
            out_specs=pl.BlockSpec((TB, Cdim, TS), lambda b, s: (b, 0, s)),
        ),
        compiler_params=pltpu.CompilerParams(
            dimension_semantics=("parallel", "parallel"),
            vmem_limit_bytes=int(vmem_limit),
        ),
        cost_estimate=cost,
    )(x)

    return out.reshape(B, Cdim, H, W)


def _reference(x, *, eps, C, k):
    # Pure-JAX mirror of torch.nn.functional.normalize(p=2, dim=1) + phi.
    norm = jnp.sqrt(jnp.sum(x.astype(jnp.float32) ** 2, axis=1, keepdims=True))
    y = x / jnp.maximum(norm, eps)
    return (C * (1.0 - k * y)).astype(x.dtype)


if __name__ == "__main__":
    eps, C, k = 1e-12, 2.0, 0.1

    # Primary test (shapes implied by the module: NCHW, normalize over channels).
    B, Cdim, H, W = 2, 4, 16, 16
    x = jax.random.normal(jax.random.PRNGKey(0), (B, Cdim, H, W), dtype=jnp.float32)
    out = jax.block_until_ready(adaptive_layer_norm(x, eps=eps, C=C, k=k))
    ref = _reference(x, eps=eps, C=C, k=k)
    assert out.shape == x.shape
    assert jnp.allclose(out, ref, atol=1e-5, rtol=1e-5), "mismatch vs reference (aligned S)"

    # Ragged spatial size: exercises the un-padded partial last S-block
    # (masked store path) that replaced the wrapper pad/slice.
    x2 = jax.random.normal(jax.random.PRNGKey(1), (2, 4, 16, 10), dtype=jnp.float32)
    out2 = jax.block_until_ready(adaptive_layer_norm(x2, eps=eps, C=C, k=k))
    ref2 = _reference(x2, eps=eps, C=C, k=k)
    assert out2.shape == x2.shape
    assert jnp.allclose(out2, ref2, atol=1e-5, rtol=1e-5), "mismatch vs reference (ragged S)"

    print("KERNEL_OK")
</pallas_src>

<mosaic_0001>
module attributes {stable_mosaic.version = 11 : i64} {
  func.func @_adaptive_ln_kernel(%arg0: i32, %arg1: i32, %arg2: memref<2x4x128xf32, #tpu.memory_space<vmem>>, %arg3: memref<2x4x128xf32, #tpu.memory_space<vmem>>) attributes {dimension_semantics = [#tpu.dimension_semantics<parallel>, #tpu.dimension_semantics<parallel>], iteration_bounds = array<i64: 1, 2>, scalar_prefetch = 0 : i64, scratch_operands = 0 : i64, tpu.core_type = #tpu.core_type<tc>, window_params = [{transform_indices = @transform_0, window_bounds = array<i64: 2, 4, 128>}, {transform_indices = @transform_1, window_bounds = array<i64: 2, 4, 128>}]} {
    %c0 = arith.constant 0 : index
    %c0_0 = arith.constant 0 : index
    %c0_1 = arith.constant 0 : index
    %0 = vector.load %arg2[%c0, %c0_0, %c0_1] : memref<2x4x128xf32, #tpu.memory_space<vmem>>, vector<2x4x128xf32>
    %1 = arith.mulf %0, %0 : vector<2x4x128xf32>
    %cst = arith.constant dense<0.000000e+00> : vector<2x128xf32>
    %2 = vector.multi_reduction <add>, %1, %cst [1] : vector<2x4x128xf32> to vector<2x128xf32>
    %3 = vector.shape_cast %2 : vector<2x128xf32> to vector<2x1x128xf32>
    %cst_2 = arith.constant 1.000000e-24 : f32
    %4 = vector.broadcast %cst_2 : f32 to vector<2x1x128xf32>
    %5 = arith.maximumf %3, %4 : vector<2x1x128xf32>
    %6 = math.rsqrt %5 : vector<2x1x128xf32>
    %cst_3 = arith.constant 2.000000e-01 : f32
    %7 = vector.broadcast %cst_3 : f32 to vector<2x1x128xf32>
    %8 = arith.mulf %7, %6 : vector<2x1x128xf32>
    %c0_4 = arith.constant 0 : index
    %c0_5 = arith.constant 0 : index
    %c0_6 = arith.constant 0 : index
    %9 = vector.load %arg2[%c0_4, %c0_5, %c0_6] : memref<2x4x128xf32, #tpu.memory_space<vmem>>, vector<2x4x128xf32>
    %10 = vector.broadcast %8 : vector<2x1x128xf32> to vector<2x4x128xf32>
    %11 = arith.mulf %9, %10 : vector<2x4x128xf32>
    %cst_7 = arith.constant 2.000000e+00 : f32
    %12 = vector.broadcast %cst_7 : f32 to vector<2x4x128xf32>
    %13 = arith.subf %12, %11 : vector<2x4x128xf32>
    %c0_8 = arith.constant 0 : index
    %c0_9 = arith.constant 0 : index
    %c0_10 = arith.constant 0 : index
    %14 = vector.load %arg3[%c0_8, %c0_9, %c0_10] : memref<2x4x128xf32, #tpu.memory_space<vmem>>, vector<2x4x128xf32>
    tpu.vector_store %arg3[%c0_8, %c0_9, %c0_10], %13 {strides = array<i32>} : memref<2x4x128xf32, #tpu.memory_space<vmem>>, vector<2x4x128xf32>,
    return
  }
  func.func @transform_0(%arg0: i32, %arg1: i32) -> (i32, i32, i32) {
    %c0_i32 = arith.constant 0 : i32
    %c0_i32_0 = arith.constant 0 : i32
    return %arg0, %c0_i32, %arg1 : i32, i32, i32
  }
  func.func @transform_1(%arg0: i32, %arg1: i32) -> (i32, i32, i32) {
    %c0_i32 = arith.constant 0 : i32
    %c0_i32_0 = arith.constant 0 : i32
    return %arg0, %c0_i32, %arg1 : i32, i32, i32
  }
}

</mosaic_0001>

<llo_original>
// kernel: tpu_custom_call.1
$region0: #{tpu_custom_call.1}
  #allocation0 [shape = 'u32[]', space=smem, size = 0x4, offset = 0x4, fixed_abs, tag = 'smem constant byte address 0x4 - core index']
  #allocation1 [shape = 'u32[144,128]{1,0:T(1,128)}', space=vmem, size = 0x12000, scoped, tag = 'internal scratch']
  %s0 = inlined_call_operand.hbm [shape: f32[2,4,256], index: 0, kind: input, shape index: {}]
  %s1 = inlined_call_operand.hbm [shape: f32[2,4,256], index: 1, kind: output, shape index: {}]
  %s2 = sld [smem:[#allocation0]]
  $region41: #{tpu_custom_call.1} parent=0
    _
  %s4 = ssub.s32 1, %s2
  %s5 = scalar_select 0, %s4, %s2
  $region1: #{tpu_custom_call.1} parent=0
    #allocation2 [shape = 'u8[8192]{0}', space=vmem, size = 0x2000, scoped, tag = 'input window, operand 0']
    #allocation3 [shape = 's32[2]{0}', space=sflag, size = 0x8, scoped, tag = 'scoped memory for tpu_custom_call.1']
    #allocation4 [shape = 's32[2]{0}', space=sflag, size = 0x8, scoped, tag = 'scoped memory for tpu_custom_call.1']
    #allocation5 [shape = 'u8[8192]{0}', space=vmem, size = 0x2000, scoped, tag = 'output window, operand 0']
    %6 = vsyncpa [#allocation3], 0
    %s7 = scalar_lea.sflag [#allocation3], 1
    %8 = vsyncpa %s7, 0
    %9 = vsyncpa [#allocation4], 0
    %s10 = scalar_lea.sflag [#allocation4], 1
    %11 = vsyncpa %s10, 0
    loop: start=0, step=1, limit=4
    $region2: #{tpu_custom_call.1} parent=1 // loop_pre_header
      _
    $region3: #{tpu_custom_call.1} parent=1 // loop_header
      %s13 = sphi 0, %s17
      %p14 = scmp.ge.s32.totalorder %s13, 4
      %s20 = sphi 0, %s32
      %s21 = sphi 0, %s28
      %s22 = sphi 0, %s20
      %s23 = sphi 0, %s21
      %s24 = sphi 0, %s22
      %s25 = sphi 0, %s23
      %s37 = sphi 0, %s39
      %s40 = sphi 0, %s37
      %s41 = sphi 0, %s40
      %s57 = sphi 0, %s41
      %s65 = sphi 0, %s67
      %s68 = sphi 0, %s65
      %s69 = sphi 0, %s68
      %s85 = sphi 0, %s69
    $region4: #{tpu_custom_call.1} parent=1 // loop_header_branch
      %16 = sbr.rel (%p14) target = $region8
    $region5: #{tpu_custom_call.1} parent=1 // loop_body
      %s18 = ssub.s32 %s13, 1
      %s19 = ssub.s32 %s13, 2
      %s26 = sadd.s32 1, %s21
      %p27 = scmp.ge.s32.totalorder %s26, 2
      %s28 = scalar_select %p27, 0, %s26
      %s29 = sadd.s32 1, %s20
      %s30 = scalar_select %p27, %s29, %s20
      %p31 = scmp.ge.s32.totalorder %s30, 1
      %s32 = scalar_select %p31, 0, %s30
      %s33 = ssub.s32 %s20, %s32
      %s34 = ssub.s32 %s21, %s28
      %s35 = sor.u32 %s33, %s34
      %p36 = scmp.eq.s32.totalorder %s35, 0
      %s38 = sadd.s32 %s37, 1
      %s39 = scalar_select %p36, %s37, %s38
      %p42 = pneg %p36
      %p43 = scmp.eq.s32.totalorder %s13, 1
      %p44 = por %p42, %p43
      %p45 = scmp.ne.s32.totalorder %s37, %s40
      %p46 = scmp.eq.s32.totalorder %s13, 0
      %p47 = por %p45, %p46
      %p48 = scmp.ne.s32.totalorder %s37, %s40
      %p49 = scmp.eq.s32.totalorder %s18, 1
      %p50 = por %p48, %p49
      %p51 = scmp.ne.s32.totalorder %s40, %s41
      %p52 = scmp.eq.s32.totalorder %s18, 0
      %p53 = por %p51, %p52
      %p54 = scmp.ne.s32.totalorder %s40, %s41
      %p55 = scmp.eq.s32.totalorder %s19, 1
      %p56 = por %p54, %p55
      %p58 = scmp.ne.s32.totalorder %s41, %s57
      %p59 = scmp.eq.s32.totalorder %s19, 0
      %p60 = por %p58, %p59
      %s61 = ssub.s32 %s20, %s32
      %s62 = ssub.s32 %s21, %s28
      %s63 = sor.u32 %s61, %s62
      %p64 = scmp.eq.s32.totalorder %s63, 0
      %s66 = sadd.s32 %s65, 1
      %s67 = scalar_select %p64, %s65, %s66
      %p70 = pneg %p64
      %p71 = scmp.eq.s32.totalorder %s13, 1
      %p72 = por %p70, %p71
      %p73 = scmp.ne.s32.totalorder %s65, %s68
      %p74 = scmp.eq.s32.totalorder %s13, 0
      %p75 = por %p73, %p74
      %p76 = scmp.ne.s32.totalorder %s65, %s68
      %p77 = scmp.eq.s32.totalorder %s18, 1
      %p78 = por %p76, %p77
      %p79 = scmp.ne.s32.totalorder %s68, %s69
      %p80 = scmp.eq.s32.totalorder %s18, 0
      %p81 = por %p79, %p80
      %p82 = scmp.ne.s32.totalorder %s68, %s69
      %p83 = scmp.eq.s32.totalorder %s19, 1
      %p84 = por %p82, %p83
      %p86 = scmp.ne.s32.totalorder %s69, %s85
      %p87 = scmp.eq.s32.totalorder %s19, 0
      %p88 = por %p86, %p87
      %p89 = scmp.le.s32.totalorder 1, %s13
      %p90 = scmp.lt.s32.totalorder %s13, 3
      %p91 = pnand %p89, %p90
      %p92 = pneg %p91
      // Predicated region
      $region9: #{tpu_custom_call.1} parent=5 // pred_check
        _
      $region10: #{tpu_custom_call.1} parent=5 // pred_check_branch
        %94 = sbr.rel (%p91) target = $region12
      $region11: #{tpu_custom_call.1} parent=5 // pred_region
        %s95 = ssub.s32 %s13, 1
      $region12: #{tpu_custom_call.1} parent=5 // pred_fallthru
        _
      %p96 = scmp.lt.s32.totalorder %s13, 2
      // Predicated region
      $region13: #{tpu_custom_call.1} parent=5 // pred_check
        %p97 = pneg %p96
      $region14: #{tpu_custom_call.1} parent=5 // pred_check_branch
        %99 = sbr.rel (%p97) target = $region16
      $region15: #{tpu_custom_call.1} parent=5 // pred_region
        // Predicated region
        $region17: #{tpu_custom_call.1} parent=15 // pred_check
          %p100 = pneg %p47
        $region18: #{tpu_custom_call.1} parent=15 // pred_check_branch
          %102 = sbr.rel (%p100) target = $region20
        $region19: #{tpu_custom_call.1} parent=15 // pred_region
          %s103 = sand.u32 %s37, 1
          %s104 = scalar_lea.sflag [#allocation3], %s103
          %s105 = sand.u32 %s37, 1
          %s106 = smul.addr %s105, 8
          %s107 = scalar_lea.vmem [#allocation2], %s106
          %s108 = smul.u32 2, %s20
          %s110 = ssub.s32 128, 128
          %111 = vsyncadd %s104, %s110
          %s112 = smul.addr %s108, 2
          %s113 = sadd.s32 %s21, %s112
          %s114 = smul.addr %s113, 64
          %s115 = scalar_lea.hbm %s0, %s114
          %s116 = sshll.u32 %s107, 4
          %s117 = int_to_ptr.vmem [resolvable:$true] %s116
          %122 = dma.hbm_to_vmem [thread:$0]  %s115, 128, %s117, %s104, 128, 64, 4
        $region20: #{tpu_custom_call.1} parent=15 // pred_fallthru
          _
      $region16: #{tpu_custom_call.1} parent=5 // pred_fallthru
        _
      %p123 = scmp.le.s32.totalorder 1, %s13
      %p124 = scmp.lt.s32.totalorder %s13, 3
      %p125 = pnand %p123, %p124
      %p126 = pneg %p125
      // Predicated region
      $region21: #{tpu_custom_call.1} parent=5 // pred_check
        _
      $region22: #{tpu_custom_call.1} parent=5 // pred_check_branch
        %128 = sbr.rel (%p125) target = $region24
      $region23: #{tpu_custom_call.1} parent=5 // pred_region
        %s129 = ssub.s32 %s13, 1
        %s130 = sand.u32 %s40, 1
        %s131 = scalar_lea.sflag [#allocation3], %s130
        %s132 = sand.u32 %s40, 1
        %s133 = smul.addr %s132, 8
        %s134 = scalar_lea.vmem [#allocation2], %s133
        // Predicated region
        $region25: #{tpu_custom_call.1} parent=23 // pred_check
          %p135 = pneg %p53
        $region26: #{tpu_custom_call.1} parent=23 // pred_check_branch
          %137 = sbr.rel (%p135) target = $region28
        $region27: #{tpu_custom_call.1} parent=23 // pred_region
          %138 = dma.done %s131, 128
        $region28: #{tpu_custom_call.1} parent=23 // pred_fallthru
          _
        %s139 = sand.u32 %s40, 1
        %s140 = scalar_lea.sflag [#allocation3], %s139
        %s141 = sand.u32 %s40, 1
        %s142 = smul.addr %s141, 8
        %s143 = scalar_lea.vmem [#allocation2], %s142
        %p144 = pneg %p53
        %p145 = pneg %p50
        %p146 = pneg %p81
        %p147 = pneg %p78
        %s148 = sand.u32 %s68, 1
        %s149 = scalar_lea.sflag [#allocation4], %s148
        %s150 = sand.u32 %s68, 1
        %s151 = smul.addr %s150, 8
        %s152 = scalar_lea.vmem [#allocation5], %s151
        %s153 = smul.u32 2, %s22
        %s154 = smul.u32 2, %s22
        %v155 = vld [vmem:[%s134] sm:$0xf]
        %v156 = vld [vmem:[%s134 + $0x4] sm:$0xf]
        %v157 = vmul.f32 %v155, %v155
        %v158 = vmul.f32 %v156, %v156
        %vm159 = vcmask 1043456
        %v160 = vsel %vm159, %v157, 0.0
        %v161 = vrot.slane %v160, 4
        %v162 = vadd.f32 %v160, %v161
        %v163 = vrot.slane %v162, 2
        %v164 = vadd.f32 %v162, %v163
        %v165 = vrot.slane %v164, 1
        %v166 = vadd.f32 %v164, %v165
        %v167 = vsel %vm159, %v158, 0.0
        %v168 = vrot.slane %v167, 4
        %v169 = vadd.f32 %v167, %v168
        %v170 = vrot.slane %v169, 2
        %v171 = vadd.f32 %v169, %v170
        %v172 = vrot.slane %v171, 1
        %v173 = vadd.f32 %v171, %v172
        %v174 = vmax.f32 %v166, 1e-24
        %v175 = vmax.f32 %v173, 1e-24
        %v176 = vrsqrt.pop %v174
        %v177 = vrsqrt.pop %v175
        %v178 = vmul.f32 %v176, 0.2
        %v179 = vmul.f32 %v177, 0.2
        %v180 = vmul.f32 %v155, %v178
        %v181 = vmul.f32 %v156, %v179
        %v182 = vsub.f32 2.0, %v180
        %v183 = vsub.f32 2.0, %v181
        %184 = vst [vmem:[%s152] sm:$0xf] %v182
        %185 = vst [vmem:[%s152 + $0x4] sm:$0xf] %v183
        %s186 = sand.u32 %s68, 1
        %s187 = scalar_lea.sflag [#allocation4], %s186
        %s188 = sand.u32 %s68, 1
        %s189 = smul.addr %s188, 8
        %s190 = scalar_lea.vmem [#allocation5], %s189
        // Predicated region
        $region29: #{tpu_custom_call.1} parent=23 // pred_check
          %p191 = pneg %p78
        $region30: #{tpu_custom_call.1} parent=23 // pred_check_branch
          %193 = sbr.rel (%p191) target = $region32
        $region31: #{tpu_custom_call.1} parent=23 // pred_region
          %s194 = smul.u32 2, %s22
          %s196 = ssub.s32 128, 128
          %197 = vsyncadd %s187, %s196
          %s198 = smul.addr %s194, 2
          %s199 = sadd.s32 %s23, %s198
          %s200 = smul.addr %s199, 64
          %s201 = scalar_lea.hbm %s1, %s200
          %s202 = sshll.u32 %s190, 4
          %s203 = int_to_ptr.vmem [resolvable:$true] %s202
          %208 = dma.vmem_to_hbm [thread:$0]  %s203, 128, %s201, %s187, 64, 128, 4
        $region32: #{tpu_custom_call.1} parent=23 // pred_fallthru
          _
      $region24: #{tpu_custom_call.1} parent=5 // pred_fallthru
        _
      %p209 = scmp.le.s32.totalorder 2, %s13
      // Predicated region
      $region33: #{tpu_custom_call.1} parent=5 // pred_check
        %p210 = pneg %p209
      $region34: #{tpu_custom_call.1} parent=5 // pred_check_branch
        %212 = sbr.rel (%p210) target = $region36
      $region35: #{tpu_custom_call.1} parent=5 // pred_region
        %s213 = ssub.s32 %s13, 2
        // Predicated region
        $region37: #{tpu_custom_call.1} parent=35 // pred_check
          %p214 = pneg %p84
        $region38: #{tpu_custom_call.1} parent=35 // pred_check_branch
          %216 = sbr.rel (%p214) target = $region40
        $region39: #{tpu_custom_call.1} parent=35 // pred_region
          %s217 = sand.u32 %s69, 1
          %s218 = scalar_lea.sflag [#allocation4], %s217
          %s219 = sand.u32 %s69, 1
          %s220 = smul.addr %s219, 8
          %s221 = scalar_lea.vmem [#allocation5], %s220
          %222 = dma.done %s218, 128
        $region40: #{tpu_custom_call.1} parent=35 // pred_fallthru
          _
      $region36: #{tpu_custom_call.1} parent=5 // pred_fallthru
        _
    $region6: #{tpu_custom_call.1} parent=1 // loop_footer
      %s17 = sadd.s32 1, %s13
    $region7: #{tpu_custom_call.1} parent=1 // loop_footer_branch
      %12 = sbr.rel target = $region3
    $region8: #{tpu_custom_call.1} parent=1 // loop_exit
      _
    %223 = vsyncpa [#allocation3], 1
    %s224 = scalar_lea.sflag [#allocation3], 1
    %225 = vsyncpa %s224, 1
    %226 = vsyncpa [#allocation4], 1
    %s227 = scalar_lea.sflag [#allocation4], 1
    %228 = vsyncpa %s227, 1

</llo_original>
